<compile_context>
chip_gen: v6e
topology: v6e:2x2x1
jax: 0.10.0
libtpu: 0.0.40
codegen_flags: <defaults>
</compile_context>

<pallas_src>
import functools

import jax
import jax.numpy as jnp
from jax.experimental import pallas as pl
from jax.experimental.pallas import tpu as pltpu


# ---------------------------------------------------------------------------
# Kernels
# ---------------------------------------------------------------------------

def _embedder_hbm_gather_kernel(ids_ref,    # SMEM (B, S) int32  -- scalar-prefetched ids
                                table_hbm,  # HBM  (V, 1, E)     -- table, never fully loaded
                                pos_ref,    # VMEM (Ts, E)       -- pos tile (reused across batch)
                                out_ref,    # VMEM (Ts, E)       -- output tile (batch squeezed)
                                sem,        # single DMA semaphore shared by all row copies
                                *, seq_tile):
    t = pl.program_id(0)
    b = pl.program_id(1)
    base = t * seq_tile

    # Issue every row gather (HBM -> output block) before waiting on any so the copies
    # overlap each other.  All copies have identical size and signal the same semaphore.
    @pl.loop(0, seq_tile)
    def _issue(i):
        tok = ids_ref[b, base + i]
        pltpu.make_async_copy(table_hbm.at[tok],             # (1, E) row in HBM
                              out_ref.at[pl.ds(i, 1), :],    # (1, E) row of the output tile
                              sem).start()

    # Wait loop: one wait per row, but with a FIXED (1, E) descriptor -- a wait only needs
    # the semaphore + byte count, so we avoid re-reading ids / rebuilding per-token
    # descriptors (scalar + vector-misc slot pressure, sst->sld forwarding stalls).
    @pl.loop(0, seq_tile)
    def _wait(i):
        pltpu.make_async_copy(table_hbm.at[0],
                              out_ref.at[pl.ds(0, 1), :],
                              sem).wait()

    # token embedding + positional encoding (dropout == identity in eval mode).
    out_ref[...] += pos_ref[...]


def _embedder_vmem_table_kernel(ids_ref,    # SMEM (B, S) int32
                                table_ref,  # VMEM (V, E)  -- whole table, constant block index
                                pos_ref,    # VMEM (Ts, E)
                                out_ref,    # VMEM (Ts, E)
                                *, seq_tile):
    t = pl.program_id(0)
    b = pl.program_id(1)
    base = t * seq_tile

    # Rows are gathered with dynamic-offset VMEM reads/writes -- no HBM DMA descriptors.
    @pl.loop(0, seq_tile)
    def _gather(i):
        tok = ids_ref[b, base + i]
        out_ref[pl.ds(i, 1), :] = table_ref[pl.ds(tok, 1), :]

    out_ref[...] += pos_ref[...]


# ---------------------------------------------------------------------------
# Helpers
# ---------------------------------------------------------------------------

def positional_encoding(seq, emb_sz, n=10000.0):
    """Matches Embedder.positional: is_even * sin(angle) + ~is_even * cos(angle)."""
    positions = jnp.arange(seq, dtype=jnp.float32)[:, None]          # (S, 1)
    d = jnp.arange(emb_sz)
    pairs = (d // 2).astype(jnp.float32)                             # (E,)
    is_even = (d % 2) == 0
    angles = positions / (n ** (2.0 * pairs / emb_sz))               # (S, E)
    return jnp.where(is_even[None, :], jnp.sin(angles), jnp.cos(angles)).astype(jnp.float32)


def _vmem_capacity_bytes():
    try:
        return int(pltpu.get_tpu_info().vmem_capacity_bytes)
    except Exception:
        return 128 * 1024 * 1024


def _vmem_table_cutoff_bytes():
    cap = _vmem_capacity_bytes()
    # Conservative: the constant-index table block may still be double-buffered, and we
    # need room for the pipelined out/pos tiles (<= ~16 MiB) plus headroom.
    if cap <= (64 << 20):          # v7x-class parts: 64 MiB physical VMEM
        return 12 << 20
    return 44 << 20                # v5e / v6e: 128 MiB VMEM


def _pick_seq_tile(S, E, max_tile=512, pipelined_vmem_budget=16 << 20):
    """Largest tile <= max_tile that divides S, keeps the double-buffered out + pos tiles
    (4 * Ts * E * 4 bytes) under the budget, and is sublane friendly (multiple of 8 or
    the full sequence)."""
    budget_rows = max(8, pipelined_vmem_budget // (16 * E))
    hi = max(1, min(S, max_tile, budget_rows))
    for t in range(hi, 0, -1):
        if S % t == 0 and (t % 8 == 0 or t == S):
            return t
    return S


# ---------------------------------------------------------------------------
# Public wrapper
# ---------------------------------------------------------------------------

def embedder(input_ids, emb_table, *, seq_tile=None, table_in_vmem=None):
    """input_ids: (B, S) int, emb_table: (V, E) float32  ->  (B, S, E) float32."""
    B, S = input_ids.shape
    V, E = emb_table.shape

    if seq_tile is None:
        seq_tile = _pick_seq_tile(S, E)
    assert S % seq_tile == 0, "sequence length must be a multiple of the sequence tile"
    n_tiles = S // seq_tile

    table_bytes = V * E * 4
    if table_in_vmem is None:
        table_in_vmem = table_bytes <= _vmem_table_cutoff_bytes()

    # Clamp ids so a bad token id cannot become an out-of-bounds gather.
    ids = jnp.clip(input_ids.astype(jnp.int32), 0, V - 1)
    pos = positional_encoding(S, E)            # (S, E) tiny batch-independent constant

    # Grid is (n_tiles, B): batch innermost so the pos block index (t, 0) is unchanged
    # across consecutive grid steps (Pallas skips its re-DMA); the larger tile axis leads
    # so v7x megacore sharding gets balanced work.  Both axes are independent.
    out_spec = pl.BlockSpec((None, seq_tile, E), lambda t, b, ids: (b, t, 0))
    pos_spec = pl.BlockSpec((seq_tile, E), lambda t, b, ids: (t, 0))

    if table_in_vmem:
        grid_spec = pltpu.PrefetchScalarGridSpec(
            num_scalar_prefetch=1,
            grid=(n_tiles, B),
            in_specs=[
                pl.BlockSpec((V, E), lambda t, b, ids: (0, 0)),   # whole table, fetched once
                pos_spec,
            ],
            out_specs=out_spec,
        )
        kernel = functools.partial(_embedder_vmem_table_kernel, seq_tile=seq_tile)
        table_arg = emb_table
        vmem_limit = min(2 * table_bytes + (24 << 20),
                         _vmem_capacity_bytes() - (8 << 20))
    else:
        grid_spec = pltpu.PrefetchScalarGridSpec(
            num_scalar_prefetch=1,
            grid=(n_tiles, B),
            in_specs=[
                pl.BlockSpec(memory_space=pl.ANY),                # table stays in HBM
                pos_spec,
            ],
            out_specs=out_spec,
            scratch_shapes=[pltpu.SemaphoreType.DMA],             # one shared DMA semaphore
        )
        kernel = functools.partial(_embedder_hbm_gather_kernel, seq_tile=seq_tile)
        table_arg = emb_table.reshape(V, 1, E)                    # per-row addressable rows
        vmem_limit = 48 << 20

    return pl.pallas_call(
        kernel,
        out_shape=jax.ShapeDtypeStruct((B, S, E), jnp.float32),
        grid_spec=grid_spec,
        compiler_params=pltpu.CompilerParams(
            dimension_semantics=("parallel", "parallel"),
            vmem_limit_bytes=int(vmem_limit)),
    )(ids, table_arg, pos)


def reference(input_ids, emb_table):
    """Pure-JAX reference mirroring the PyTorch Embedder (eval mode)."""
    S = input_ids.shape[1]
    E = emb_table.shape[1]
    return emb_table[input_ids] + positional_encoding(S, E)[None]


if __name__ == "__main__":
    B, S, E, V = 2, 8, 32, 50

    key = jax.random.PRNGKey(0)
    k_tab, k_ids = jax.random.split(key)
    emb_table = 0.1 * jax.random.normal(k_tab, (V, E), jnp.float32)
    input_ids = jax.random.randint(k_ids, (B, S), 0, V, dtype=jnp.int32)

    ref = reference(input_ids, emb_table)

    # Exercise both the VMEM-resident-table fast path (small tables) and the
    # HBM row-gather path (large tables).
    for in_vmem in (True, False):
        out = jax.block_until_ready(embedder(input_ids, emb_table, table_in_vmem=in_vmem))
        assert out.shape == (B, S, E)
        err = float(jnp.abs(out - ref).max())
        assert jnp.allclose(out, ref, atol=1e-5, rtol=1e-5), (in_vmem, err)

    print("KERNEL_OK")
</pallas_src>

<mosaic_0001>
module attributes {stable_mosaic.version = 11 : i64} {
  func.func @_embedder_vmem_table_kernel(%arg0: i32, %arg1: i32, %arg2: memref<2x8xi32, #tpu.memory_space<smem>>, %arg3: memref<50x32xf32, #tpu.memory_space<vmem>>, %arg4: memref<8x32xf32, #tpu.memory_space<vmem>>, %arg5: memref<1x8x32xf32, #tpu.memory_space<vmem>>) attributes {dimension_semantics = [#tpu.dimension_semantics<parallel>, #tpu.dimension_semantics<parallel>], iteration_bounds = array<i64: 1, 2>, scalar_prefetch = 1 : i64, scratch_operands = 0 : i64, tpu.core_type = #tpu.core_type<tc>, window_params = [{pipeline_mode = #tpu.pipeline_mode<synchronous>, transform_indices = @transform_0, window_bounds = array<i64: 50, 32>}, {transform_indices = @transform_1, window_bounds = array<i64: 8, 32>}, {transform_indices = @transform_2, window_bounds = array<i64: 1, 8, 32>}]} {
    %c8_i32 = arith.constant 8 : i32
    %0 = arith.muli %arg0, %c8_i32 : i32
    %c0_i32 = arith.constant 0 : i32
    %c8_i32_0 = arith.constant 8 : i32
    %1 = arith.addi %c0_i32, %c8_i32_0 : i32
    %c1_i32 = arith.constant 1 : i32
    scf.for %arg6 = %c0_i32 to %1 step %c1_i32  : i32 {
      %c1_i32_9 = arith.constant 1 : i32
      %9 = arith.muli %arg6, %c1_i32_9 : i32
      %c0_i32_10 = arith.constant 0 : i32
      %10 = arith.addi %c0_i32_10, %9 : i32
      %11 = arith.addi %0, %10 : i32
      %12 = arith.index_cast %arg1 : i32 to index
      %13 = arith.index_cast %11 : i32 to index
      %14 = memref.load %arg2[%12, %13] : memref<2x8xi32, #tpu.memory_space<smem>>
      %15 = arith.index_cast %14 : i32 to index
      %c0_11 = arith.constant 0 : index
      %16 = vector.load %arg3[%15, %c0_11] : memref<50x32xf32, #tpu.memory_space<vmem>>, vector<1x32xf32>
      %c0_12 = arith.constant 0 : index
      %17 = arith.index_cast %10 : i32 to index
      %c0_13 = arith.constant 0 : index
      %18 = vector.load %arg5[%c0_12, %17, %c0_13] : memref<1x8x32xf32, #tpu.memory_space<vmem>>, vector<1x1x32xf32>
      %19 = vector.shape_cast %18 : vector<1x1x32xf32> to vector<1x32xf32>
      %20 = vector.shape_cast %16 : vector<1x32xf32> to vector<1x1x32xf32>
      tpu.vector_store %arg5[%c0_12, %17, %c0_13], %20 {strides = array<i32>} : memref<1x8x32xf32, #tpu.memory_space<vmem>>, vector<1x1x32xf32>,
    }
    %c8_i32_1 = arith.constant 8 : i32
    %c0 = arith.constant 0 : index
    %c0_2 = arith.constant 0 : index
    %c0_3 = arith.constant 0 : index
    %2 = vector.load %arg5[%c0, %c0_2, %c0_3] : memref<1x8x32xf32, #tpu.memory_space<vmem>>, vector<1x8x32xf32>
    %3 = vector.shape_cast %2 : vector<1x8x32xf32> to vector<8x32xf32>
    %c0_4 = arith.constant 0 : index
    %c0_5 = arith.constant 0 : index
    %4 = vector.load %arg4[%c0_4, %c0_5] : memref<8x32xf32, #tpu.memory_space<vmem>>, vector<8x32xf32>
    %5 = arith.addf %3, %4 : vector<8x32xf32>
    %c0_6 = arith.constant 0 : index
    %c0_7 = arith.constant 0 : index
    %c0_8 = arith.constant 0 : index
    %6 = vector.load %arg5[%c0_6, %c0_7, %c0_8] : memref<1x8x32xf32, #tpu.memory_space<vmem>>, vector<1x8x32xf32>
    %7 = vector.shape_cast %6 : vector<1x8x32xf32> to vector<8x32xf32>
    %8 = vector.shape_cast %5 : vector<8x32xf32> to vector<1x8x32xf32>
    tpu.vector_store %arg5[%c0_6, %c0_7, %c0_8], %8 {strides = array<i32>} : memref<1x8x32xf32, #tpu.memory_space<vmem>>, vector<1x8x32xf32>,
    return
  }
  func.func @transform_0(%arg0: i32, %arg1: i32, %arg2: memref<2x8xi32, #tpu.memory_space<smem>>) -> (i32, i32) {
    %c0_i32 = arith.constant 0 : i32
    %c0_i32_0 = arith.constant 0 : i32
    %c0_i32_1 = arith.constant 0 : i32
    return %c0_i32, %c0_i32_0 : i32, i32
  }
  func.func @transform_1(%arg0: i32, %arg1: i32, %arg2: memref<2x8xi32, #tpu.memory_space<smem>>) -> (i32, i32) {
    %c0_i32 = arith.constant 0 : i32
    %c0_i32_0 = arith.constant 0 : i32
    return %arg0, %c0_i32 : i32, i32
  }
  func.func @transform_2(%arg0: i32, %arg1: i32, %arg2: memref<2x8xi32, #tpu.memory_space<smem>>) -> (i32, i32, i32) {
    %c0_i32 = arith.constant 0 : i32
    %c0_i32_0 = arith.constant 0 : i32
    return %arg1, %arg0, %c0_i32 : i32, i32, i32
  }
}

</mosaic_0001>

<llo_original>
// kernel: tpu_custom_call.1
$region0: #{tpu_custom_call.1}
  #allocation0 [shape = 'u32[]', space=smem, size = 0x4, offset = 0x4, fixed_abs, tag = 'smem constant byte address 0x4 - core index']
  #allocation1 [shape = 'u32[144,128]{1,0:T(1,128)}', space=vmem, size = 0x12000, scoped, tag = 'internal scratch']
  #allocation2 [shape = 's32[1]{0}', space=sflag, size = 0x4, scoped, tag = 'scoped memory for tpu_custom_call.1']
  #allocation3 [shape = 'u8[1024]{0}', space=smem, size = 0x400, scoped, tag = 'prefetched SMEM operand 0']
  %s0 = inlined_call_operand.vmem [shape: s32[2,8], index: 0, kind: input, shape index: {}]
  %s1 = inlined_call_operand.vmem [shape: f32[50,32], index: 1, kind: input, shape index: {}]
  %s2 = inlined_call_operand.vmem [shape: f32[8,32], index: 2, kind: input, shape index: {}]
  %s3 = inlined_call_operand.hbm [shape: f32[2,8,32], index: 3, kind: output, shape index: {}]
  %s4 = sld [smem:[#allocation0]]
  $region48: #{tpu_custom_call.1} parent=0
    _
  %s6 = ssub.s32 1, %s4
  %s7 = scalar_select 0, %s6, %s4
  %s8 = sshll.u32 %s0, 4
  %s9 = int_to_ptr.vmem [resolvable:$true] %s8
  %11 = dma.vmem_to_smem %s9, 32, [#allocation3], [#allocation2]
  %12 = dma.done [#allocation2], 32
  %13 = sfence
  $region1: #{tpu_custom_call.1} parent=0
    #allocation4 [shape = 'u8[8192]{0}', space=vmem, size = 0x2000, scoped, tag = 'output window, operand 0']
    #allocation5 [shape = 's32[2]{0}', space=sflag, size = 0x8, scoped, tag = 'scoped memory for tpu_custom_call.1']
    %14 = vsyncpa [#allocation5], 0
    %s15 = scalar_lea.sflag [#allocation5], 1
    %16 = vsyncpa %s15, 0
    loop: start=0, step=1, limit=4
    $region2: #{tpu_custom_call.1} parent=1 // loop_pre_header
      _
    $region3: #{tpu_custom_call.1} parent=1 // loop_header
      %s18 = sphi 0, %s22
      %p19 = scmp.ge.s32.totalorder %s18, 4
      %s25 = sphi 0, %s37
      %s26 = sphi 0, %s33
      %s27 = sphi 0, %s25
      %s28 = sphi 0, %s26
      %s29 = sphi 0, %s27
      %s30 = sphi 0, %s28
      %s38 = sphi 0, %s38
      %s40 = sphi 0, %s38
      %s41 = sphi 0, %s40
      %s55 = sphi 0, %s41
      %s61 = sphi 0, %s63
      %s64 = sphi 0, %s61
      %s65 = sphi 0, %s64
      %s81 = sphi 0, %s65
      %s89 = sphi 0, %s91
      %s92 = sphi 0, %s89
      %s93 = sphi 0, %s92
      %s109 = sphi 0, %s93
    $region4: #{tpu_custom_call.1} parent=1 // loop_header_branch
      %21 = sbr.rel (%p19) target = $region8
    $region5: #{tpu_custom_call.1} parent=1 // loop_body
      %s23 = ssub.s32 %s18, 1
      %s24 = ssub.s32 %s18, 2
      %s31 = sadd.s32 1, %s26
      %p32 = scmp.ge.s32.totalorder %s31, 2
      %s33 = scalar_select %p32, 0, %s31
      %s34 = sadd.s32 1, %s25
      %s35 = scalar_select %p32, %s34, %s25
      %p36 = scmp.ge.s32.totalorder %s35, 1
      %s37 = scalar_select %p36, 0, %s35
      %s39 = sadd.s32 %s38, 1
      %p42 = scmp.eq.s32.totalorder %s18, 1
      %p43 = scmp.ne.s32.totalorder %s38, %s40
      %p44 = scmp.eq.s32.totalorder %s18, 0
      %p45 = por %p43, %p44
      %p46 = scmp.ne.s32.totalorder %s38, %s40
      %p47 = scmp.eq.s32.totalorder %s23, 1
      %p48 = por %p46, %p47
      %p49 = scmp.ne.s32.totalorder %s40, %s41
      %p50 = scmp.eq.s32.totalorder %s23, 0
      %p51 = por %p49, %p50
      %p52 = scmp.ne.s32.totalorder %s40, %s41
      %p53 = scmp.eq.s32.totalorder %s24, 1
      %p54 = por %p52, %p53
      %p56 = scmp.ne.s32.totalorder %s41, %s55
      %p57 = scmp.eq.s32.totalorder %s24, 0
      %p58 = por %p56, %p57
      %s59 = ssub.s32 %s25, %s37
      %p60 = scmp.eq.s32.totalorder %s59, 0
      %s62 = sadd.s32 %s61, 1
      %s63 = scalar_select %p60, %s61, %s62
      %p66 = pneg %p60
      %p67 = scmp.eq.s32.totalorder %s18, 1
      %p68 = por %p66, %p67
      %p69 = scmp.ne.s32.totalorder %s61, %s64
      %p70 = scmp.eq.s32.totalorder %s18, 0
      %p71 = por %p69, %p70
      %p72 = scmp.ne.s32.totalorder %s61, %s64
      %p73 = scmp.eq.s32.totalorder %s23, 1
      %p74 = por %p72, %p73
      %p75 = scmp.ne.s32.totalorder %s64, %s65
      %p76 = scmp.eq.s32.totalorder %s23, 0
      %p77 = por %p75, %p76
      %p78 = scmp.ne.s32.totalorder %s64, %s65
      %p79 = scmp.eq.s32.totalorder %s24, 1
      %p80 = por %p78, %p79
      %p82 = scmp.ne.s32.totalorder %s65, %s81
      %p83 = scmp.eq.s32.totalorder %s24, 0
      %p84 = por %p82, %p83
      %s85 = ssub.s32 %s26, %s33
      %s86 = ssub.s32 %s25, %s37
      %s87 = sor.u32 %s85, %s86
      %p88 = scmp.eq.s32.totalorder %s87, 0
      %s90 = sadd.s32 %s89, 1
      %s91 = scalar_select %p88, %s89, %s90
      %p94 = pneg %p88
      %p95 = scmp.eq.s32.totalorder %s18, 1
      %p96 = por %p94, %p95
      %p97 = scmp.ne.s32.totalorder %s89, %s92
      %p98 = scmp.eq.s32.totalorder %s18, 0
      %p99 = por %p97, %p98
      %p100 = scmp.ne.s32.totalorder %s89, %s92
      %p101 = scmp.eq.s32.totalorder %s23, 1
      %p102 = por %p100, %p101
      %p103 = scmp.ne.s32.totalorder %s92, %s93
      %p104 = scmp.eq.s32.totalorder %s23, 0
      %p105 = por %p103, %p104
      %p106 = scmp.ne.s32.totalorder %s92, %s93
      %p107 = scmp.eq.s32.totalorder %s24, 1
      %p108 = por %p106, %p107
      %p110 = scmp.ne.s32.totalorder %s93, %s109
      %p111 = scmp.eq.s32.totalorder %s24, 0
      %p112 = por %p110, %p111
      %p113 = scmp.le.s32.totalorder 1, %s18
      %p114 = scmp.lt.s32.totalorder %s18, 3
      %p115 = pnand %p113, %p114
      %p116 = pneg %p115
      // Predicated region
      $region9: #{tpu_custom_call.1} parent=5 // pred_check
        _
      $region10: #{tpu_custom_call.1} parent=5 // pred_check_branch
        %118 = sbr.rel (%p115) target = $region12
      $region11: #{tpu_custom_call.1} parent=5 // pred_region
        %s119 = ssub.s32 %s18, 1
        // Predicated region
        $region13: #{tpu_custom_call.1} parent=11 // pred_check
          %p120 = pneg %p51
        $region14: #{tpu_custom_call.1} parent=11 // pred_check_branch
          %122 = sbr.rel (%p120) target = $region16
        $region15: #{tpu_custom_call.1} parent=11 // pred_region
          _
        $region16: #{tpu_custom_call.1} parent=11 // pred_fallthru
          _
        // Predicated region
        $region17: #{tpu_custom_call.1} parent=11 // pred_check
          %p123 = pneg %p77
        $region18: #{tpu_custom_call.1} parent=11 // pred_check_branch
          %125 = sbr.rel (%p123) target = $region20
        $region19: #{tpu_custom_call.1} parent=11 // pred_region
          %p126 = scmp.lt.s32.totalorder %s27, 0
          %s127 = scalar_select %p126, %s27, 0
          %s128 = smul.addr %s127, 8
          %s129 = scalar_lea.vmem %s2, %s128
        $region20: #{tpu_custom_call.1} parent=11 // pred_fallthru
          _
      $region12: #{tpu_custom_call.1} parent=5 // pred_fallthru
        _
      %p130 = scmp.lt.s32.totalorder %s18, 2
      // Predicated region
      $region21: #{tpu_custom_call.1} parent=5 // pred_check
        %p131 = pneg %p130
      $region22: #{tpu_custom_call.1} parent=5 // pred_check_branch
        %133 = sbr.rel (%p131) target = $region24
      $region23: #{tpu_custom_call.1} parent=5 // pred_region
        _
      $region24: #{tpu_custom_call.1} parent=5 // pred_fallthru
        _
      %p134 = scmp.le.s32.totalorder 1, %s18
      %p135 = scmp.lt.s32.totalorder %s18, 3
      %p136 = pnand %p134, %p135
      %p137 = pneg %p136
      // Predicated region
      $region25: #{tpu_custom_call.1} parent=5 // pred_check
        _
      $region26: #{tpu_custom_call.1} parent=5 // pred_check_branch
        %139 = sbr.rel (%p136) target = $region28
      $region27: #{tpu_custom_call.1} parent=5 // pred_region
        %s140 = ssub.s32 %s18, 1
        %p141 = pneg %p51
        %p142 = pneg %p48
        %p143 = scmp.lt.s32.totalorder %s27, 0
        %s144 = scalar_select %p143, %s27, 0
        %s145 = smul.addr %s144, 8
        %s146 = scalar_lea.vmem %s2, %s145
        %p147 = pneg %p77
        %p148 = pneg %p74
        %p149 = pneg %p105
        %p150 = pneg %p102
        %s151 = sand.u32 %s92, 1
        %s152 = scalar_lea.sflag [#allocation5], %s151
        %s153 = sand.u32 %s92, 1
        %s154 = smul.addr %s153, 8
        %s155 = scalar_lea.vmem [#allocation4], %s154
        %p156 = scmp.lt.s32.totalorder %s27, 0
        %s157 = scalar_select %p156, %s27, 0
        %s158 = smul.addr %s157, 8
        %s159 = scalar_lea.vmem %s2, %s158
        %s160 = smul.u32 %s27, 8
        loop: start=0, step=1, limit=8
        $region29: #{tpu_custom_call.1} parent=27 // loop_pre_header
          _
        $region30: #{tpu_custom_call.1} parent=27 // loop_header
          %s162 = sphi 0, %s166
          %p163 = scmp.ge.s32.totalorder %s162, 8
        $region31: #{tpu_custom_call.1} parent=27 // loop_header_branch
          %165 = sbr.rel (%p163) target = $region35
        $region32: #{tpu_custom_call.1} parent=27 // loop_body
          %s167 = sadd.s32 %s160, %s162
          %s168 = sshra.s32 %s167, 7
          %s169 = sand.u32 %s167, 127
          %s170 = sadd.s32 %s168, %s28
          %s171 = smul.u32 %s170, 128
          %s172 = sshra.s32 %s167, 7
          %s173 = sand.u32 %s167, 127
          %s174 = sadd.s32 %s171, %s173
          %s175 = sld [smem:[#allocation3 + %s174]]
          %s176 = scalar_lea.vmem %s1, %s175
          %v177 = vld [vmem:[%s176] sm:$0x1]
          %s178 = scalar_lea.vmem %s155, %s162 [#allocation4]
          %vm179 = vcmask 253952
          %180 = vst.msk [vmem:[%s178] sm:$0x1] %vm179, %v177
        $region33: #{tpu_custom_call.1} parent=27 // loop_footer
          %s166 = sadd.s32 1, %s162
        $region34: #{tpu_custom_call.1} parent=27 // loop_footer_branch
          %161 = sbr.rel target = $region30
        $region35: #{tpu_custom_call.1} parent=27 // loop_exit
          _
        %v181 = vld [vmem:[%s155] sm:$0xff]
        %v182 = vld [vmem:[%s159] sm:$0xff]
        %v183 = vadd.f32 %v181, %v182
        %vm184 = vcmask 261120
        %185 = vst.msk [vmem:[%s155] sm:$0xff] %vm184, %v183
        %s186 = sand.u32 %s92, 1
        %s187 = scalar_lea.sflag [#allocation5], %s186
        %s188 = sand.u32 %s92, 1
        %s189 = smul.addr %s188, 8
        %s190 = scalar_lea.vmem [#allocation4], %s189
        // Predicated region
        $region36: #{tpu_custom_call.1} parent=27 // pred_check
          %p191 = pneg %p102
        $region37: #{tpu_custom_call.1} parent=27 // pred_check_branch
          %193 = sbr.rel (%p191) target = $region39
        $region38: #{tpu_custom_call.1} parent=27 // pred_region
          %s195 = ssub.s32 128, 128
          %196 = vsyncadd %s187, %s195
          %s197 = sadd.s32 %s27, %s28
          %s198 = smul.addr %s197, 128
          %s199 = scalar_lea.hbm %s3, %s198
          %s201 = sshll.u32 %s190, 4
          %s202 = int_to_ptr.vmem [resolvable:$true] %s201
          %204 = dma.vmem_to_hbm [thread:$0]  %s202, 128, %s199, %s187
        $region39: #{tpu_custom_call.1} parent=27 // pred_fallthru
          _
      $region28: #{tpu_custom_call.1} parent=5 // pred_fallthru
        _
      %p205 = scmp.le.s32.totalorder 2, %s18
      // Predicated region
      $region40: #{tpu_custom_call.1} parent=5 // pred_check
        %p206 = pneg %p205
      $region41: #{tpu_custom_call.1} parent=5 // pred_check_branch
        %208 = sbr.rel (%p206) target = $region43
      $region42: #{tpu_custom_call.1} parent=5 // pred_region
        %s209 = ssub.s32 %s18, 2
        // Predicated region
        $region44: #{tpu_custom_call.1} parent=42 // pred_check
          %p210 = pneg %p108
        $region45: #{tpu_custom_call.1} parent=42 // pred_check_branch
          %212 = sbr.rel (%p210) target = $region47
        $region46: #{tpu_custom_call.1} parent=42 // pred_region
          %s213 = sand.u32 %s93, 1
          %s214 = scalar_lea.sflag [#allocation5], %s213
          %s215 = sand.u32 %s93, 1
          %s216 = smul.addr %s215, 8
          %s217 = scalar_lea.vmem [#allocation4], %s216
          %218 = dma.done %s214, 128
        $region47: #{tpu_custom_call.1} parent=42 // pred_fallthru
          _
      $region43: #{tpu_custom_call.1} parent=5 // pred_fallthru
        _
    $region6: #{tpu_custom_call.1} parent=1 // loop_footer
      %s22 = sadd.s32 1, %s18
    $region7: #{tpu_custom_call.1} parent=1 // loop_footer_branch
      %17 = sbr.rel target = $region3
    $region8: #{tpu_custom_call.1} parent=1 // loop_exit
      _
    %219 = vsyncpa [#allocation5], 1
    %s220 = scalar_lea.sflag [#allocation5], 1
    %221 = vsyncpa %s220, 1

</llo_original>
